<compile_context>
chip_gen: v6e
topology: v6e:2x2x1
jax: 0.10.0
libtpu: 0.0.40
codegen_flags: <defaults>
</compile_context>

<pallas_src>
import math

import jax
import jax.numpy as jnp
from jax.experimental import pallas as pl
from jax.experimental.pallas import tpu as pltpu


def _mix_u32(x):
    """Murmur3-style 32-bit finalizer: avalanches counters into random bits."""
    x = x ^ (x >> 16)
    x = x * jnp.uint32(0x7FEB352D)
    x = x ^ (x >> 15)
    x = x * jnp.uint32(0x846CA68B)
    x = x ^ (x >> 16)
    return x


def _bits_to_unit(bits_u32):
    """uint32 random bits -> float32 uniform in [0, 1), exact in f32."""
    b24 = (bits_u32 >> 8).astype(jnp.int32)              # top 24 bits, < 2**24
    return b24.astype(jnp.float32) * jnp.float32(1.0 / (1 << 24))


def _pick_col_tile(hw):
    """Largest legal lane tile: whole width if small, else a 128-multiple divisor."""
    if hw <= 2048:
        return hw
    for t in (2048, 1024, 512, 256, 128):
        if hw % t == 0:
            return t
    return hw  # fallback: full width (block == full array dim is always legal)


def noise_input(x, seed=0):
    """Pallas equivalent of NoiseInput.forward. x: (B, H, W) -> (B+3, H, W)."""
    B, H, W = x.shape
    HW = H * W
    dtype = x.dtype
    x2 = x.reshape(B, HW)                    # lane-dense layout: last dim = H*W
    T = _pick_col_tile(HW)
    grid = (HW // T,)

    def kernel(seed_ref, x_ref, out_ref):
        bT = x_ref.shape[1]
        j = pl.program_id(0)
        # Spread the seed across the 32-bit counter space (large odd constant).
        seed_off = seed_ref[0] * jnp.int32(1013904223)

        # --- concat part 1: copy the x tile (full-lane-width store). ---
        out_ref[0:B, :] = x_ref[...]

        # Global column counters for this tile (stream 0 = uniform row).
        col = jax.lax.broadcasted_iota(jnp.int32, (1, bT), 1) + j * bT + seed_off

        # --- ones row. ---
        out_ref[B:B + 1, :] = jnp.ones((1, bT), dtype=out_ref.dtype)

        # --- uniform row: U[0, 1). ---
        uni = _bits_to_unit(_mix_u32(col.astype(jnp.uint32)))
        uni = uni.astype(out_ref.dtype)
        if jnp.dtype(out_ref.dtype) != jnp.float32:
            # Down-cast can round values just below 1.0 up to 1.0; keep U[0, 1).
            top = jnp.asarray(1.0 - float(jnp.finfo(out_ref.dtype).eps) / 2,
                              out_ref.dtype)
            uni = jnp.minimum(uni, top)
        out_ref[B + 1:B + 2, :] = uni

        # --- clipped-normal row: clamp(0.5 + N(0,1), 0, 1) via Box-Muller. ---
        two_pi = jnp.float32(2.0 * math.pi)
        if bT % 2 == 0:
            # Use both Box-Muller outputs: one log/sqrt pair feeds two columns.
            half = bT // 2
            pc = col[:, :half]
            u1 = _bits_to_unit(_mix_u32((pc + HW).astype(jnp.uint32)))
            u2 = _bits_to_unit(_mix_u32((pc + 2 * HW).astype(jnp.uint32)))
            r = jnp.sqrt(-2.0 * jnp.log(1.0 - u1))        # 1 - u1 in (0, 1]
            theta = two_pi * u2
            z = jnp.concatenate([r * jnp.cos(theta), r * jnp.sin(theta)], axis=-1)
        else:
            u1 = _bits_to_unit(_mix_u32((col + HW).astype(jnp.uint32)))
            u2 = _bits_to_unit(_mix_u32((col + 2 * HW).astype(jnp.uint32)))
            z = jnp.sqrt(-2.0 * jnp.log(1.0 - u1)) * jnp.cos(two_pi * u2)
        out_ref[B + 2:B + 3, :] = jnp.clip(
            jnp.float32(0.5) + z, 0.0, 1.0).astype(out_ref.dtype)

    out2 = pl.pallas_call(
        kernel,
        out_shape=jax.ShapeDtypeStruct((B + 3, HW), dtype),
        grid_spec=pltpu.PrefetchScalarGridSpec(
            num_scalar_prefetch=1,                        # seed lives in SMEM
            grid=grid,
            in_specs=[pl.BlockSpec((B, T), lambda j, seed: (0, j))],
            out_specs=pl.BlockSpec((B + 3, T), lambda j, seed: (0, j)),
        ),
        compiler_params=pltpu.CompilerParams(
            # "parallel": lets v7x shard column tiles across its 2 TensorCores;
            # harmless no-op on single-core v5e/v6e.
            dimension_semantics=("parallel",),
            # Explicit, conservative VMEM budget (fits v7x's 64 MiB physical).
            vmem_limit_bytes=32 * 1024 * 1024,
        ),
    )(jnp.asarray([seed], dtype=jnp.int32), x2)

    return out2.reshape(B + 3, H, W)


if __name__ == "__main__":
    key = jax.random.PRNGKey(0)
    B, H, W = 4, 16, 16
    x = jax.random.normal(key, (B, H, W), dtype=jnp.float32)

    out = jax.block_until_ready(noise_input(x, seed=0))

    # Sanity checks on the forward semantics.
    assert out.shape == (B + 3, H, W), out.shape
    assert jnp.allclose(out[:B], x), "x slice not copied correctly"
    assert jnp.allclose(out[B], 1.0), "ones slice wrong"
    assert bool(jnp.all((out[B + 1] >= 0.0) & (out[B + 1] < 1.0))), "uniform out of range"
    assert bool(jnp.all((out[B + 2] >= 0.0) & (out[B + 2] <= 1.0))), "clipped normal out of range"
    # Random slices should not be degenerate/constant.
    assert float(jnp.std(out[B + 1])) > 0.05, "uniform slice looks constant"
    assert float(jnp.std(out[B + 2])) > 0.05, "normal slice looks constant"

    print("KERNEL_OK")
</pallas_src>

<mosaic_0001>
module attributes {stable_mosaic.version = 11 : i64} {
  func.func @kernel(%arg0: i32, %arg1: memref<1xi32, #tpu.memory_space<smem>>, %arg2: memref<4x256xf32, #tpu.memory_space<vmem>>, %arg3: memref<7x256xf32, #tpu.memory_space<vmem>>) attributes {dimension_semantics = [#tpu.dimension_semantics<parallel>], iteration_bounds = array<i64: 1>, scalar_prefetch = 1 : i64, scratch_operands = 0 : i64, tpu.core_type = #tpu.core_type<tc>, window_params = [{transform_indices = @transform_0, window_bounds = array<i64: 4, 256>}, {transform_indices = @transform_1, window_bounds = array<i64: 7, 256>}]} {
    %c0 = arith.constant 0 : index
    %0 = memref.load %arg1[%c0] : memref<1xi32, #tpu.memory_space<smem>>
    %c1013904223_i32 = arith.constant 1013904223 : i32
    %1 = arith.muli %0, %c1013904223_i32 : i32
    %c0_0 = arith.constant 0 : index
    %c0_1 = arith.constant 0 : index
    %2 = vector.load %arg2[%c0_0, %c0_1] : memref<4x256xf32, #tpu.memory_space<vmem>>, vector<4x256xf32>
    %c0_2 = arith.constant 0 : index
    %c0_3 = arith.constant 0 : index
    %3 = vector.load %arg3[%c0_2, %c0_3] : memref<7x256xf32, #tpu.memory_space<vmem>>, vector<4x256xf32>
    tpu.vector_store %arg3[%c0_2, %c0_3], %2 {strides = array<i32>} : memref<7x256xf32, #tpu.memory_space<vmem>>, vector<4x256xf32>,
    %4 = tpu.iota {dimensions = array<i32: 1>} : vector<1x256xi32>
    %c256_i32 = arith.constant 256 : i32
    %5 = arith.muli %arg0, %c256_i32 : i32
    %6 = vector.broadcast %5 : i32 to vector<1x256xi32>
    %7 = arith.addi %4, %6 : vector<1x256xi32>
    %8 = vector.broadcast %1 : i32 to vector<1x256xi32>
    %9 = arith.addi %7, %8 : vector<1x256xi32>
    %cst = arith.constant 1.000000e+00 : f32
    %10 = vector.broadcast %cst : f32 to vector<1x256xf32>
    %c4 = arith.constant 4 : index
    %c0_4 = arith.constant 0 : index
    %11 = vector.load %arg3[%c4, %c0_4] : memref<7x256xf32, #tpu.memory_space<vmem>>, vector<1x256xf32>
    tpu.vector_store %arg3[%c4, %c0_4], %10 {strides = array<i32>} : memref<7x256xf32, #tpu.memory_space<vmem>>, vector<1x256xf32>,
    %c16_i32 = arith.constant 16 : i32
    %12 = vector.broadcast %c16_i32 : i32 to vector<1x256xi32>
    %13 = arith.shrui %9, %12 : vector<1x256xi32>
    %14 = arith.xori %9, %13 : vector<1x256xi32>
    %c2146121005_i32 = arith.constant 2146121005 : i32
    %15 = vector.broadcast %c2146121005_i32 : i32 to vector<1x256xi32>
    %16 = arith.muli %14, %15 : vector<1x256xi32>
    %c15_i32 = arith.constant 15 : i32
    %17 = vector.broadcast %c15_i32 : i32 to vector<1x256xi32>
    %18 = arith.shrui %16, %17 : vector<1x256xi32>
    %19 = arith.xori %16, %18 : vector<1x256xi32>
    %c-2073254261_i32 = arith.constant -2073254261 : i32
    %20 = vector.broadcast %c-2073254261_i32 : i32 to vector<1x256xi32>
    %21 = arith.muli %19, %20 : vector<1x256xi32>
    %c16_i32_5 = arith.constant 16 : i32
    %22 = vector.broadcast %c16_i32_5 : i32 to vector<1x256xi32>
    %23 = arith.shrui %21, %22 : vector<1x256xi32>
    %24 = arith.xori %21, %23 : vector<1x256xi32>
    %c8_i32 = arith.constant 8 : i32
    %25 = vector.broadcast %c8_i32 : i32 to vector<1x256xi32>
    %26 = arith.shrui %24, %25 : vector<1x256xi32>
    %27 = arith.sitofp %26 : vector<1x256xi32> to vector<1x256xf32>
    %cst_6 = arith.constant 5.96046448E-8 : f32
    %28 = vector.broadcast %cst_6 : f32 to vector<1x256xf32>
    %29 = arith.mulf %27, %28 : vector<1x256xf32>
    %c5 = arith.constant 5 : index
    %c0_7 = arith.constant 0 : index
    %30 = vector.load %arg3[%c5, %c0_7] : memref<7x256xf32, #tpu.memory_space<vmem>>, vector<1x256xf32>
    tpu.vector_store %arg3[%c5, %c0_7], %29 {strides = array<i32>} : memref<7x256xf32, #tpu.memory_space<vmem>>, vector<1x256xf32>,
    %31 = vector.extract_strided_slice %9 {offsets = [0, 0], sizes = [1, 128], strides = [1, 1]} : vector<1x256xi32> to vector<1x128xi32>
    %c256_i32_8 = arith.constant 256 : i32
    %32 = vector.broadcast %c256_i32_8 : i32 to vector<1x128xi32>
    %33 = arith.addi %31, %32 : vector<1x128xi32>
    %c16_i32_9 = arith.constant 16 : i32
    %34 = vector.broadcast %c16_i32_9 : i32 to vector<1x128xi32>
    %35 = arith.shrui %33, %34 : vector<1x128xi32>
    %36 = arith.xori %33, %35 : vector<1x128xi32>
    %c2146121005_i32_10 = arith.constant 2146121005 : i32
    %37 = vector.broadcast %c2146121005_i32_10 : i32 to vector<1x128xi32>
    %38 = arith.muli %36, %37 : vector<1x128xi32>
    %c15_i32_11 = arith.constant 15 : i32
    %39 = vector.broadcast %c15_i32_11 : i32 to vector<1x128xi32>
    %40 = arith.shrui %38, %39 : vector<1x128xi32>
    %41 = arith.xori %38, %40 : vector<1x128xi32>
    %c-2073254261_i32_12 = arith.constant -2073254261 : i32
    %42 = vector.broadcast %c-2073254261_i32_12 : i32 to vector<1x128xi32>
    %43 = arith.muli %41, %42 : vector<1x128xi32>
    %c16_i32_13 = arith.constant 16 : i32
    %44 = vector.broadcast %c16_i32_13 : i32 to vector<1x128xi32>
    %45 = arith.shrui %43, %44 : vector<1x128xi32>
    %46 = arith.xori %43, %45 : vector<1x128xi32>
    %c8_i32_14 = arith.constant 8 : i32
    %47 = vector.broadcast %c8_i32_14 : i32 to vector<1x128xi32>
    %48 = arith.shrui %46, %47 : vector<1x128xi32>
    %49 = arith.sitofp %48 : vector<1x128xi32> to vector<1x128xf32>
    %cst_15 = arith.constant 5.96046448E-8 : f32
    %50 = vector.broadcast %cst_15 : f32 to vector<1x128xf32>
    %51 = arith.mulf %49, %50 : vector<1x128xf32>
    %c512_i32 = arith.constant 512 : i32
    %52 = vector.broadcast %c512_i32 : i32 to vector<1x128xi32>
    %53 = arith.addi %31, %52 : vector<1x128xi32>
    %c16_i32_16 = arith.constant 16 : i32
    %54 = vector.broadcast %c16_i32_16 : i32 to vector<1x128xi32>
    %55 = arith.shrui %53, %54 : vector<1x128xi32>
    %56 = arith.xori %53, %55 : vector<1x128xi32>
    %c2146121005_i32_17 = arith.constant 2146121005 : i32
    %57 = vector.broadcast %c2146121005_i32_17 : i32 to vector<1x128xi32>
    %58 = arith.muli %56, %57 : vector<1x128xi32>
    %c15_i32_18 = arith.constant 15 : i32
    %59 = vector.broadcast %c15_i32_18 : i32 to vector<1x128xi32>
    %60 = arith.shrui %58, %59 : vector<1x128xi32>
    %61 = arith.xori %58, %60 : vector<1x128xi32>
    %c-2073254261_i32_19 = arith.constant -2073254261 : i32
    %62 = vector.broadcast %c-2073254261_i32_19 : i32 to vector<1x128xi32>
    %63 = arith.muli %61, %62 : vector<1x128xi32>
    %c16_i32_20 = arith.constant 16 : i32
    %64 = vector.broadcast %c16_i32_20 : i32 to vector<1x128xi32>
    %65 = arith.shrui %63, %64 : vector<1x128xi32>
    %66 = arith.xori %63, %65 : vector<1x128xi32>
    %c8_i32_21 = arith.constant 8 : i32
    %67 = vector.broadcast %c8_i32_21 : i32 to vector<1x128xi32>
    %68 = arith.shrui %66, %67 : vector<1x128xi32>
    %69 = arith.sitofp %68 : vector<1x128xi32> to vector<1x128xf32>
    %cst_22 = arith.constant 5.96046448E-8 : f32
    %70 = vector.broadcast %cst_22 : f32 to vector<1x128xf32>
    %71 = arith.mulf %69, %70 : vector<1x128xf32>
    %cst_23 = arith.constant 1.000000e+00 : f32
    %72 = vector.broadcast %cst_23 : f32 to vector<1x128xf32>
    %73 = arith.subf %72, %51 : vector<1x128xf32>
    %74 = math.log %73 : vector<1x128xf32>
    %cst_24 = arith.constant -2.000000e+00 : f32
    %75 = vector.broadcast %cst_24 : f32 to vector<1x128xf32>
    %76 = arith.mulf %75, %74 : vector<1x128xf32>
    %77 = math.sqrt %76 : vector<1x128xf32>
    %cst_25 = arith.constant 6.28318548 : f32
    %78 = vector.broadcast %cst_25 : f32 to vector<1x128xf32>
    %79 = arith.mulf %78, %71 : vector<1x128xf32>
    %80 = math.cos %79 : vector<1x128xf32>
    %81 = arith.mulf %77, %80 : vector<1x128xf32>
    %82 = math.sin %79 : vector<1x128xf32>
    %83 = arith.mulf %77, %82 : vector<1x128xf32>
    %84 = tpu.concatenate %81, %83 in 1 : vector<1x128xf32>, vector<1x128xf32> -> vector<1x256xf32>
    %cst_26 = arith.constant 5.000000e-01 : f32
    %85 = vector.broadcast %cst_26 : f32 to vector<1x256xf32>
    %86 = arith.addf %85, %84 : vector<1x256xf32>
    %cst_27 = arith.constant 0.000000e+00 : f32
    %cst_28 = arith.constant 1.000000e+00 : f32
    %87 = vector.broadcast %cst_27 : f32 to vector<1x256xf32>
    %88 = arith.maximumf %87, %86 : vector<1x256xf32>
    %89 = vector.broadcast %cst_28 : f32 to vector<1x256xf32>
    %90 = arith.minimumf %89, %88 : vector<1x256xf32>
    %c6 = arith.constant 6 : index
    %c0_29 = arith.constant 0 : index
    %91 = vector.load %arg3[%c6, %c0_29] : memref<7x256xf32, #tpu.memory_space<vmem>>, vector<1x256xf32>
    tpu.vector_store %arg3[%c6, %c0_29], %90 {strides = array<i32>} : memref<7x256xf32, #tpu.memory_space<vmem>>, vector<1x256xf32>,
    return
  }
  func.func @transform_0(%arg0: i32, %arg1: memref<1xi32, #tpu.memory_space<smem>>) -> (i32, i32) {
    %c0_i32 = arith.constant 0 : i32
    %c0_i32_0 = arith.constant 0 : i32
    return %c0_i32, %arg0 : i32, i32
  }
  func.func @transform_1(%arg0: i32, %arg1: memref<1xi32, #tpu.memory_space<smem>>) -> (i32, i32) {
    %c0_i32 = arith.constant 0 : i32
    %c0_i32_0 = arith.constant 0 : i32
    return %c0_i32, %arg0 : i32, i32
  }
}

</mosaic_0001>

<llo_original>
// kernel: tpu_custom_call.1
$region0: #{tpu_custom_call.1}
  #allocation0 [shape = 'u32[]', space=smem, size = 0x4, offset = 0x4, fixed_abs, tag = 'smem constant byte address 0x4 - core index']
  #allocation1 [shape = 'u32[144,128]{1,0:T(1,128)}', space=vmem, size = 0x12000, scoped, tag = 'internal scratch']
  #allocation2 [shape = 's32[1]{0}', space=sflag, size = 0x4, scoped, tag = 'scoped memory for tpu_custom_call.1']
  #allocation3 [shape = 's32[1]{0:T(128)S(6)}', space=smem, size = 0x200, scoped, tag = 'prefetched SMEM operand 0']
  %s0 = inlined_call_operand.<no memory space> [shape: s32[1], index: 0, kind: input, shape index: {}]
  %s1 = inlined_call_operand.hbm [shape: f32[4,256], index: 1, kind: input, shape index: {}]
  %s2 = inlined_call_operand.hbm [shape: f32[7,256], index: 2, kind: output, shape index: {}]
  %s3 = sld [smem:[#allocation0]]
  $region18: #{tpu_custom_call.1} parent=0
    _
  %s5 = ssub.s32 1, %s3
  %s6 = scalar_select 0, %s5, %s3
  %7 = sst [smem:[#allocation3]] %s0
  $region1: #{tpu_custom_call.1} parent=0
    #allocation4 [shape = 'u8[4096]{0}', space=vmem, size = 0x1000, scoped, tag = 'input window, operand 1, single buffered']
    #allocation5 [shape = 's32[1]{0}', space=sflag, size = 0x4, scoped, tag = 'scoped memory for tpu_custom_call.1']
    #allocation6 [shape = 's32[1]{0}', space=sflag, size = 0x4, scoped, tag = 'scoped memory for tpu_custom_call.1']
    #allocation7 [shape = 'u8[8192]{0}', space=vmem, size = 0x2000, scoped, tag = 'output window, operand 0, single buffered']
    %8 = vsyncpa [#allocation5], 0
    %9 = vsyncpa [#allocation6], 0
    // Predicated region
    $region2: #{tpu_custom_call.1} parent=1 // pred_check
      _
    $region3: #{tpu_custom_call.1} parent=1 // pred_check_branch
      %11 = sbr.rel (0) target = $region5
    $region4: #{tpu_custom_call.1} parent=1 // pred_region
      %s13 = ssub.s32 128, 128
      %14 = vsyncadd [#allocation5], %s13
      %s16 = sshll.u32 [#allocation4], 4
      %s17 = int_to_ptr.vmem [resolvable:$true] %s16
      %19 = dma.hbm_to_vmem [thread:$0]  %s1, 128, %s17, [#allocation5]
    $region5: #{tpu_custom_call.1} parent=1 // pred_fallthru
      _
    // Predicated region
    $region6: #{tpu_custom_call.1} parent=1 // pred_check
      _
    $region7: #{tpu_custom_call.1} parent=1 // pred_check_branch
      %21 = sbr.rel (0) target = $region9
    $region8: #{tpu_custom_call.1} parent=1 // pred_region
      %22 = dma.done [#allocation5], 128
    $region9: #{tpu_custom_call.1} parent=1 // pred_fallthru
      _
    %s23 = sld [smem:[#allocation3]]
    %s24 = smul.u32 %s23, 1013904223
    %v25 = vld [vmem:[#allocation4] sm:$0xff]
    %v27 = vcombine.high %v25, %v25
    %29 = vst [vmem:[#allocation7] sm:$0xf] %v25
    %30 = vst [vmem:[#allocation7 + $0x8] sm:$0xf] %v27
    %v31 = vlaneseq
    %v32 = vand.u32 %v31, 127
    %v33 = vadd.s32 %v32, 128
    %s34 = smul.u32 0, 256
    %v35 = vstv %s34
    %v36 = vadd.s32 %v32, %v35
    %v37 = vadd.s32 %v33, %v35
    %v38 = vstv %s24
    %v39 = vadd.s32 %v36, %v38
    %v40 = vadd.s32 %v37, %v38
    %v41 = vlaneseq
    %vm42 = vcmp.ge.s32.totalorder %v41, 0
    %vm43 = vcmp.lt.s32.totalorder %v41, 256
    %vm44 = vmand %vm42, %vm43
    %s45 = scalar_lea.vmem [#allocation7], 4
    %46 = vst.msk [vmem:[%s45] ss:$8 sm:$0x3] %vm44, 1.0
    %47 = vst.msk [vmem:[%s45] ss:$8 sm:$0x0] %vm44, 1.0
    %v48 = vshrl.u32 %v39, 16
    %v49 = vshrl.u32 %v40, 16
    %v50 = vxor.u32 %v39, %v48
    %v51 = vxor.u32 %v40, %v49
    %v52 = vmul.u32 %v50, 2146121005
    %v53 = vmul.u32 %v51, 2146121005
    %v54 = vshrl.u32 %v52, 15
    %v55 = vshrl.u32 %v53, 15
    %v56 = vxor.u32 %v52, %v54
    %v57 = vxor.u32 %v53, %v55
    %v58 = vmul.u32 %v56, 2221713035
    %v59 = vmul.u32 %v57, 2221713035
    %v60 = vshrl.u32 %v58, 16
    %v61 = vshrl.u32 %v59, 16
    %v62 = vxor.u32 %v58, %v60
    %v63 = vxor.u32 %v59, %v61
    %v64 = vshrl.u32 %v62, 8
    %v65 = vshrl.u32 %v63, 8
    %v66 = vcvt.s32.f32 %v64
    %v67 = vcvt.s32.f32 %v65
    %v68 = vmul.f32 %v66, 5.9604645e-08
    %v69 = vmul.f32 %v67, 5.9604645e-08
    %v72 = vcombine.low %v68, %v69
    %v74 = vunpack.c.l.s4 1966171168
    %v75 = vunpack.c.0.s8 %v74
    %v76 = vlaneseq
    %v77 = vshrl.u32 %v76, 7
    %v78 = vsub.s32 %v75, %v77
    %v79 = vrot.slane %v72, %v78
    %v81 = vunpack.c.l.s4 1966171168
    %v82 = vunpack.c.0.s8 %v81
    %v83 = vlaneseq
    %v84 = vshrl.u32 %v83, 7
    %v85 = vsub.s32 %v82, %v84
    %v86 = vrot.slane %v79, %v85
    %s88 = scalar_lea.vmem [#allocation7], 5
    %89 = vst.msk [vmem:[%s88] ss:$8 sm:$0x3] %vm44, %v86
    %90 = vst.msk [vmem:[%s88] ss:$8 sm:$0x0] %vm44, %v86
    %v91 = vadd.s32 %v39, 256
    %v92 = vshrl.u32 %v91, 16
    %v93 = vxor.u32 %v91, %v92
    %v94 = vmul.u32 %v93, 2146121005
    %v95 = vshrl.u32 %v94, 15
    %v96 = vxor.u32 %v94, %v95
    %v97 = vmul.u32 %v96, 2221713035
    %v98 = vshrl.u32 %v97, 16
    %v99 = vxor.u32 %v97, %v98
    %v100 = vshrl.u32 %v99, 8
    %v101 = vcvt.s32.f32 %v100
    %v102 = vmul.f32 %v101, 5.9604645e-08
    %v103 = vadd.s32 %v39, 512
    %v104 = vshrl.u32 %v103, 16
    %v105 = vxor.u32 %v103, %v104
    %v106 = vmul.u32 %v105, 2146121005
    %v107 = vshrl.u32 %v106, 15
    %v108 = vxor.u32 %v106, %v107
    %v109 = vmul.u32 %v108, 2221713035
    %v110 = vshrl.u32 %v109, 16
    %v111 = vxor.u32 %v109, %v110
    %v112 = vshrl.u32 %v111, 8
    %v113 = vcvt.s32.f32 %v112
    %v114 = vmul.f32 %v113, 5.9604645e-08
    %v115 = vsub.f32 1.0, %v102
    %v116 = vlog2.pop %v115
    %v117 = vmul.f32 %v116, 0.6931472
    %v118 = vmul.f32 %v117, -2.0
    %v119 = vrsqrt.pop %v118
    %v120 = vmul.f32 %v118, %v119
    %vm121 = vcmp.eq.f32.partialorder %v118, inf
    %v122 = vsel %vm121, %v118, %v120
    %vm123 = vcmp.eq.f32.partialorder %v118, 0.0
    %v124 = vand.u32 %v118, 2147483648
    %v125 = vsel %vm123, %v124, %v122
    %v126 = vmul.f32 %v114, 6.2831855
    %v127 = vand.u32 2147483647, %v126
    %vm128 = vcmp.le.f32.partialorder %v127, 0.7853982
    %vm129 = vcmp.lt.s32.totalorder %v126, 0
    %v130 = vand.u32 %v126, 2139095040
    %v131 = vshrl.u32 %v130, 23
    %v132 = vsub.s32 %v131, 127
    %v133 = vand.u32 2147483647, %v126
    %v134 = vand.u32 %v133, 8388607
    %v135 = vor.u32 %v134, 8388608
    %v136 = vsub.s32 0, %v135
    %v137 = vadd.s32 %v132, 1
    %vm138 = vcmp.gt.s32.totalorder %v137, 0
    %v139 = vsel %vm138, %v137, 0
    %v140 = vshrl.u32 %v139, 5
    %v141 = vand.u32 %v139, 31
    %v142 = vsub.s32 32, %v141
    %v143 = vshrl.u32 683565275, %v142
    %v144 = vshll.u32 683565275, %v141
    %v145 = vshrl.u32 2475754826, %v142
    %v146 = vor.u32 %v144, %v145
    %v147 = vshll.u32 2475754826, %v141
    %v148 = vshrl.u32 2131351028, %v142
    %v149 = vor.u32 %v147, %v148
    %v150 = vshll.u32 2131351028, %v141
    %v151 = vshrl.u32 2102212464, %v142
    %v152 = vor.u32 %v150, %v151
    %v153 = vshll.u32 2102212464, %v141
    %v154 = vshrl.u32 920167782, %v142
    %v155 = vor.u32 %v153, %v154
    %v156 = vshll.u32 920167782, %v141
    %v157 = vshrl.u32 1326507024, %v142
    %v158 = vor.u32 %v156, %v157
    %vm159 = vcmp.lt.s32.totalorder %v140, 1
    %vm160 = vcmp.lt.s32.totalorder %v140, 2
    %vm161 = vcmp.lt.s32.totalorder %v140, 3
    %vm162 = vcmp.lt.s32.totalorder %v140, 4
    %v163 = vsel %vm159, %v143, %v146
    %v164 = vsel %vm162, %v152, 2102212464
    %v165 = vsel %vm161, %v149, %v164
    %v166 = vsel %vm160, %v163, %v165
    %v167 = vsel %vm159, %v146, %v149
    %v168 = vsel %vm162, %v155, 920167782
    %v169 = vsel %vm161, %v152, %v168
    %v170 = vsel %vm160, %v167, %v169
    %v171 = vsel %vm159, %v149, %v152
    %v172 = vsel %vm162, %v158, 1326507024
    %v173 = vsel %vm161, %v155, %v172
    %v174 = vsel %vm160, %v171, %v173
    %v175 = vshll.u32 %v135, 8
    %v176 = vmul.u32.u64.compose %v175, %v174
    %v177 = vextract.low.u32 %v176
    %v178 = vextract.high.u32 %v176
    %v179 = vmul.u32.u64.compose %v175, %v170
    %v180 = vextract.low.u32 %v179
    %v181 = vextract.high.u32 %v179
    %v182 = vmul.u32 %v175, %v166
    %v183 = vadd.s32 %v178, %v180
    %vm184 = vc.u32 %v178, %v180
    %v185 = vadd.s32 %v181, 1
    %v186 = vsel %vm184, %v185, %v181
    %v187 = vadd.s32 %v182, %v186
    %v188 = vadd.s32 %v187, 536870912
    %v189 = vshrl.u32 %v188, 30
    %v190 = vshll.u32 %v189, 30
    %v191 = vsub.s32 %v187, %v190
    %vm192 = vcmp.lt.s32.totalorder %v191, 0
    %v193 = vsub.s32 0, %v191
    %v194 = vsel %vm192, %v193, %v191
    %v195 = vclz %v194
    %v196 = vsub.s32 %v195, 2
    %vm197 = vcmp.gt.s32.totalorder 0, %v196
    %v198 = vsel %vm197, 0, %v196
    %v199 = vsub.s32 32, %v198
    %v200 = vshll.u32 %v191, %v198
    %v201 = vshrl.u32 %v183, %v199
    %v202 = vor.u32 %v200, %v201
    %v203 = vsub.s32 4294967266, %v198
    %v204 = vadd.s32 %v203, 127
    %v205 = vshll.u32 %v204, 23
    %v206 = vor.u32 4788187, %v205
    %v207 = vand.u32 2147483647, %v206
    %v209 = vcvt.s32.f32 %v202
    %v210 = vmul.f32 %v209, %v207
    %v211 = vxor.u32 %v210, 2147483648
    %v212 = vsel %vm129, %v211, %v210
    %v213 = vsub.s32 4, %v189
    %v214 = vsel %vm129, %v213, %v189
    %v215 = vsel %vm128, %v126, %v212
    %v216 = vsel %vm128, 0, %v214
    %v217 = vcosq.f32.pop %v215
    %v218 = vsinq.f32.pop %v215
    %vm219 = vweird.f32 %v126
    %v220 = vand.u32 %v216, 3
    %vm221 = vcmp.lt.s32.totalorder %v220, 2
    %vm222 = vcmp.eq.s32.totalorder %v220, 0
    %v223 = vxor.u32 %v218, 2147483648
    %v224 = vsel %vm222, %v217, %v223
    %vm225 = vcmp.eq.s32.totalorder %v220, 2
    %v226 = vxor.u32 %v217, 2147483648
    %v227 = vsel %vm225, %v226, %v218
    %v228 = vsel %vm221, %v224, %v227
    %v229 = vsel %vm219, nan, %v228
    %v230 = vmul.f32 %v125, %v229
    %v231 = vand.u32 2147483647, %v126
    %vm232 = vcmp.le.f32.partialorder %v231, 0.7853982
    %vm233 = vcmp.lt.s32.totalorder %v126, 0
    %v234 = vand.u32 %v126, 2139095040
    %v235 = vshrl.u32 %v234, 23
    %v236 = vsub.s32 %v235, 127
    %v237 = vand.u32 2147483647, %v126
    %v238 = vand.u32 %v237, 8388607
    %v239 = vor.u32 %v238, 8388608
    %v240 = vsub.s32 0, %v239
    %v241 = vadd.s32 %v236, 1
    %vm242 = vcmp.gt.s32.totalorder %v241, 0
    %v243 = vsel %vm242, %v241, 0
    %v244 = vshrl.u32 %v243, 5
    %v245 = vand.u32 %v243, 31
    %v246 = vsub.s32 32, %v245
    %v247 = vshrl.u32 683565275, %v246
    %v248 = vshll.u32 683565275, %v245
    %v249 = vshrl.u32 2475754826, %v246
    %v250 = vor.u32 %v248, %v249
    %v251 = vshll.u32 2475754826, %v245
    %v252 = vshrl.u32 2131351028, %v246
    %v253 = vor.u32 %v251, %v252
    %v254 = vshll.u32 2131351028, %v245
    %v255 = vshrl.u32 2102212464, %v246
    %v256 = vor.u32 %v254, %v255
    %v257 = vshll.u32 2102212464, %v245
    %v258 = vshrl.u32 920167782, %v246
    %v259 = vor.u32 %v257, %v258
    %v260 = vshll.u32 920167782, %v245
    %v261 = vshrl.u32 1326507024, %v246
    %v262 = vor.u32 %v260, %v261
    %vm263 = vcmp.lt.s32.totalorder %v244, 1
    %vm264 = vcmp.lt.s32.totalorder %v244, 2
    %vm265 = vcmp.lt.s32.totalorder %v244, 3
    %vm266 = vcmp.lt.s32.totalorder %v244, 4
    %v267 = vsel %vm263, %v247, %v250
    %v268 = vsel %vm266, %v256, 2102212464
    %v269 = vsel %vm265, %v253, %v268
    %v270 = vsel %vm264, %v267, %v269
    %v271 = vsel %vm263, %v250, %v253
    %v272 = vsel %vm266, %v259, 920167782
    %v273 = vsel %vm265, %v256, %v272
    %v274 = vsel %vm264, %v271, %v273
    %v275 = vsel %vm263, %v253, %v256
    %v276 = vsel %vm266, %v262, 1326507024
    %v277 = vsel %vm265, %v259, %v276
    %v278 = vsel %vm264, %v275, %v277
    %v279 = vshll.u32 %v239, 8
    %v280 = vmul.u32.u64.compose %v279, %v278
    %v281 = vextract.low.u32 %v280
    %v282 = vextract.high.u32 %v280
    %v283 = vmul.u32.u64.compose %v279, %v274
    %v284 = vextract.low.u32 %v283
    %v285 = vextract.high.u32 %v283
    %v286 = vmul.u32 %v279, %v270
    %v287 = vadd.s32 %v282, %v284
    %vm288 = vc.u32 %v282, %v284
    %v289 = vadd.s32 %v285, 1
    %v290 = vsel %vm288, %v289, %v285
    %v291 = vadd.s32 %v286, %v290
    %v292 = vadd.s32 %v291, 536870912
    %v293 = vshrl.u32 %v292, 30
    %v294 = vshll.u32 %v293, 30
    %v295 = vsub.s32 %v291, %v294
    %vm296 = vcmp.lt.s32.totalorder %v295, 0
    %v297 = vsub.s32 0, %v295
    %v298 = vsel %vm296, %v297, %v295
    %v299 = vclz %v298
    %v300 = vsub.s32 %v299, 2
    %vm301 = vcmp.gt.s32.totalorder 0, %v300
    %v302 = vsel %vm301, 0, %v300
    %v303 = vsub.s32 32, %v302
    %v304 = vshll.u32 %v295, %v302
    %v305 = vshrl.u32 %v287, %v303
    %v306 = vor.u32 %v304, %v305
    %v307 = vsub.s32 4294967266, %v302
    %v308 = vadd.s32 %v307, 127
    %v309 = vshll.u32 %v308, 23
    %v310 = vor.u32 4788187, %v309
    %v311 = vand.u32 2147483647, %v310
    %v313 = vcvt.s32.f32 %v306
    %v314 = vmul.f32 %v313, %v311
    %v315 = vxor.u32 %v314, 2147483648
    %v316 = vsel %vm233, %v315, %v314
    %v317 = vsub.s32 4, %v293
    %v318 = vsel %vm233, %v317, %v293
    %v319 = vsel %vm232, %v126, %v316
    %v320 = vsel %vm232, 0, %v318
    %v321 = vcosq.f32.pop %v319
    %v322 = vsinq.f32.pop %v319
    %vm323 = vweird.f32 %v126
    %v324 = vadd.s32 %v320, 3
    %v325 = vand.u32 %v324, 3
    %vm326 = vcmp.lt.s32.totalorder %v325, 2
    %vm327 = vcmp.eq.s32.totalorder %v325, 0
    %v328 = vxor.u32 %v322, 2147483648
    %v329 = vsel %vm327, %v321, %v328
    %vm330 = vcmp.eq.s32.totalorder %v325, 2
    %v331 = vxor.u32 %v321, 2147483648
    %v332 = vsel %vm330, %v331, %v322
    %v333 = vsel %vm326, %v329, %v332
    %v334 = vsel %vm323, nan, %v333
    %v335 = vmul.f32 %v125, %v334
    %v336 = vadd.f32 %v230, 0.5
    %v337 = vadd.f32 %v335, 0.5
    %v338 = vmax.f32 %v336, 0.0
    %v339 = vmax.f32 %v337, 0.0
    %v340 = vmin.f32 %v338, 1.0
    %v341 = vmin.f32 %v339, 1.0
    %v344 = vcombine.low %v340, %v341
    %v346 = vunpack.c.l.s4 1966171168
    %v347 = vunpack.c.0.s8 %v346
    %v348 = vlaneseq
    %v349 = vshrl.u32 %v348, 7
    %v350 = vsub.s32 %v347, %v349
    %v351 = vrot.slane %v344, %v350
    %v353 = vunpack.c.l.s4 1966171168
    %v354 = vunpack.c.0.s8 %v353
    %v355 = vlaneseq
    %v356 = vshrl.u32 %v355, 7
    %v357 = vsub.s32 %v354, %v356
    %v358 = vrot.slane %v351, %v357
    %s360 = scalar_lea.vmem [#allocation7], 6
    %361 = vst.msk [vmem:[%s360] ss:$8 sm:$0x3] %vm44, %v358
    %362 = vst.msk [vmem:[%s360] ss:$8 sm:$0x0] %vm44, %v358
    // Predicated region
    $region10: #{tpu_custom_call.1} parent=1 // pred_check
      _
    $region11: #{tpu_custom_call.1} parent=1 // pred_check_branch
      %364 = sbr.rel (0) target = $region13
    $region12: #{tpu_custom_call.1} parent=1 // pred_region
      %s366 = ssub.s32 256, 256
      %367 = vsyncadd [#allocation6], %s366
      %s369 = sshll.u32 [#allocation7], 4
      %s370 = int_to_ptr.vmem [resolvable:$true] %s369
      %372 = dma.vmem_to_hbm [thread:$0]  %s370, 256, %s2, [#allocation6]
    $region13: #{tpu_custom_call.1} parent=1 // pred_fallthru
      _
    // Predicated region
    $region14: #{tpu_custom_call.1} parent=1 // pred_check
      _
    $region15: #{tpu_custom_call.1} parent=1 // pred_check_branch
      %374 = sbr.rel (0) target = $region17
    $region16: #{tpu_custom_call.1} parent=1 // pred_region
      %375 = dma.done [#allocation6], 256
    $region17: #{tpu_custom_call.1} parent=1 // pred_fallthru
      _
    %376 = vsyncpa [#allocation5], 1
    %377 = vsyncpa [#allocation6], 1

</llo_original>
